<compile_context>
chip_gen: v7x
topology: tpu7x:2x2x1
jax: 0.10.0
libtpu: 0.0.40
codegen_flags: <defaults>
</compile_context>

<pallas_src>
import functools

import jax
import jax.numpy as jnp
from jax.experimental import pallas as pl
from jax.experimental.pallas import tpu as pltpu


def _round_up(x, m):
    return ((x + m - 1) // m) * m


def attention_kernel(si_ref, hj_ref, wT_ref, vT_ref, b_ref, fcw_ref,
                     ctx_ref, attn_ref, *, t_actual, compute_dtype,
                     mxu_context):
    BB, Tp, Denc = hj_ref.shape
    Ddec = si_ref.shape[-1]
    A = vT_ref.shape[-1]

    hj = hj_ref[...]                                     # (BB, Tp, Denc)

    # V(Hj): one well-shaped (BB*Tp, Denc) @ (Denc, A) MXU matmul.  Tp is a
    # host-padded multiple of 8, so this reshape is layout-free.
    v = jnp.dot(hj.reshape(BB * Tp, Denc), vT_ref[...],
                preferred_element_type=jnp.float32)      # (BB*Tp, A)

    # W(Si_1) for all BB rows in one matmul; fold the bias in here on the tiny
    # (BB, A) tensor instead of broadcasting it over (BB, Tp, A).
    u = jnp.dot(si_ref[...].reshape(BB, Ddec), wT_ref[...],
                preferred_element_type=jnp.float32)      # (BB, A)
    u = u + b_ref[...]

    zin = v.reshape(BB, Tp, A) + u[:, None, :]           # (BB, Tp, A)
    if compute_dtype != jnp.float32:
        zin = zin.astype(compute_dtype)                  # bf16 EUP tanh (v6e/v7x)
    z = jnp.tanh(zin)

    # fc(z): contract over A (lanes) via multiply + lane reduce — no z.T and no
    # M=1 matmuls.  fc bias is omitted: softmax is shift-invariant.
    score = (z * fcw_ref[...]).sum(axis=-1).astype(jnp.float32)   # (BB, Tp)

    if t_actual < Tp:  # mask host-padded key positions
        col = jax.lax.broadcasted_iota(jnp.int32, score.shape, 1)
        score = jnp.where(col < t_actual, score, jnp.float32(-1e30))

    # Softmax over T (f32 throughout; approx reciprocal -> EUP slot).
    m = jnp.max(score, axis=-1, keepdims=True)
    e = jnp.exp(score - m)
    attn = e * pl.reciprocal(jnp.sum(e, axis=-1, keepdims=True), approx=True)

    attn_ref[...] = attn.astype(attn_ref.dtype)          # lane-dense (BB, Tp)

    # context = sum_t attn[:, t] * Hj[:, t, :]   (attn kept in f32)
    if mxu_context:
        ctx = jnp.einsum("bqt,btd->bqd", attn[:, None, :],
                         hj.astype(jnp.float32),
                         preferred_element_type=jnp.float32)     # (BB, 1, Denc)
        ctx_ref[...] = ctx.astype(ctx_ref.dtype)
    else:
        # Small T*Denc: VPU multiply + sublane reduce beats BB M=1 MXU matmuls.
        ctx = jnp.sum(attn[:, :, None] * hj.astype(jnp.float32), axis=1)
        ctx_ref[...] = ctx[:, None, :].astype(ctx_ref.dtype)


def _vmem_budget():
    """Returns (block-sizing budget bytes, vmem_limit_bytes) per TPU generation."""
    try:
        cap = pltpu.get_tpu_info().vmem_capacity_bytes
    except Exception:
        cap = 64 * 1024 * 1024                    # conservative (v7x-sized)
    if cap >= 128 * 1024 * 1024:                  # v5e / v6e
        return 88 * 1024 * 1024, 100 * 1024 * 1024
    return 40 * 1024 * 1024, 48 * 1024 * 1024     # v7x (64 MiB physical)


def _pick_block_b(B, Tp, Denc, Ddec, A, itemsize, budget):
    """Largest 8-aligned batch block whose *padded* VMEM footprint fits."""
    lane = lambda x: _round_up(x, 128)
    per_row = (
        2 * Tp * lane(Denc) * itemsize        # Hj in block   (double-buffered)
        + 2 * 8 * lane(Ddec) * itemsize       # Si in block   (double-buffered)
        + 2 * 8 * lane(Denc) * itemsize       # context out   (double-buffered)
        + 2 * lane(Tp) * itemsize             # attn out      (double-buffered)
        + 2 * Tp * lane(A) * 4                # v / z intermediates (f32)
        + Tp * lane(Denc) * 4                 # f32 Hj copy for the context sum
        + 2 * lane(Tp) * 4                    # score / attn intermediates
    )
    const = 2 * (_round_up(Ddec, 8) + _round_up(Denc, 8) + 16) * lane(A) * itemsize
    avail = max(budget - const, 8 * per_row)
    bb = max(8, (avail // per_row) // 8 * 8)
    bb = min(bb, _round_up(B, 8))
    # Keep >= 2 grid steps when the batch allows it (v7x megacore sharding).
    if _round_up(B, 8) >= 16 and pl.cdiv(_round_up(B, 8), bb) < 2:
        bb = max(8, _round_up(pl.cdiv(_round_up(B, 8), 2), 8))
    return int(bb)


@functools.partial(jax.jit, static_argnames=("block_b",))
def attention_pallas(Si_1, Hj, W, V, b, fc_w, fc_b=None, *, block_b=None):
    """Si_1: (B, 1, Ddec), Hj: (B, T, Denc) -> (context (B, 1, Denc), attn (B, T)).

    fc_b is accepted for API parity with the PyTorch module but unused
    (softmax shift-invariance makes it a no-op for both outputs).
    """
    B, _, Ddec = Si_1.shape
    _, T, Denc = Hj.shape
    A = W.shape[0]

    budget, vmem_limit = _vmem_budget()

    # Pad T to a sublane multiple (layout-free in-kernel reshape); padded key
    # positions are masked inside the kernel.
    Tp = _round_up(T, 8)
    if Tp != T:
        Hj = jnp.pad(Hj, ((0, 0), (0, Tp - T), (0, 0)))

    if block_b is None:
        block_b = _pick_block_b(B, Tp, Denc, Ddec, A, Hj.dtype.itemsize, budget)
    block_b = min(_round_up(int(block_b), 8), _round_up(B, 8))

    # Pad batch to a multiple of block_b; padded rows are sliced off at the end.
    Bp = pl.cdiv(B, block_b) * block_b
    if Bp != B:
        pad = Bp - B
        Si_1 = jnp.pad(Si_1, ((0, pad), (0, 0), (0, 0)))
        Hj = jnp.pad(Hj, ((0, pad), (0, 0), (0, 0)))

    # Host-side weight prep: pre-transpose (no in-kernel XLU transposes) and
    # match the activation dtype (bf16 activations -> bf16 DMAs + bf16 MXU
    # with f32 accumulation).  b / fc_w stay f32 (VPU adds / reduce).
    act_dtype = Hj.dtype
    wT = W.T.astype(act_dtype)                  # (Ddec, A)
    vT = V.T.astype(act_dtype)                  # (Denc, A)
    b2 = b.reshape(1, A).astype(jnp.float32)
    fcw2 = fc_w.reshape(1, A).astype(jnp.float32)

    compute_dtype = jnp.bfloat16 if act_dtype == jnp.bfloat16 else jnp.float32
    mxu_context = (Tp * Denc) >= (64 * 1024)

    kernel = functools.partial(attention_kernel, t_actual=T,
                               compute_dtype=compute_dtype,
                               mxu_context=mxu_context)

    grid_spec = pltpu.PrefetchScalarGridSpec(
        num_scalar_prefetch=0,
        grid=(Bp // block_b,),
        in_specs=[
            pl.BlockSpec((block_b, 1, Ddec), lambda i: (i, 0, 0)),    # Si_1
            pl.BlockSpec((block_b, Tp, Denc), lambda i: (i, 0, 0)),   # Hj
            # TODO(synk): pipeline_mode=pl.Buffered(1) on these constant-index
            # weight specs would reclaim one VMEM buffer each (helps v7x).
            pl.BlockSpec((Ddec, A), lambda i: (0, 0)),                # W^T
            pl.BlockSpec((Denc, A), lambda i: (0, 0)),                # V^T
            pl.BlockSpec((1, A), lambda i: (0, 0)),                   # b
            pl.BlockSpec((1, A), lambda i: (0, 0)),                   # fc weight
        ],
        out_specs=[
            pl.BlockSpec((block_b, 1, Denc), lambda i: (i, 0, 0)),    # context
            pl.BlockSpec((block_b, Tp), lambda i: (i, 0)),            # attn
        ],
    )

    context, attn = pl.pallas_call(
        kernel,
        out_shape=(
            jax.ShapeDtypeStruct((Bp, 1, Denc), Si_1.dtype),
            jax.ShapeDtypeStruct((Bp, Tp), Si_1.dtype),
        ),
        grid_spec=grid_spec,
        compiler_params=pltpu.CompilerParams(
            dimension_semantics=("parallel",),
            vmem_limit_bytes=vmem_limit,
        ),
    )(Si_1, Hj, wT, vT, b2, fcw2)

    return context[:B], attn[:B, :T]


def attention_ref(Si_1, Hj, W, V, b, fc_w, fc_b):
    """Pure-JAX reference matching the PyTorch forward exactly (incl. fc bias)."""
    u = Si_1 @ W.T                        # (B, 1, A)
    v = Hj @ V.T                          # (B, T, A)
    z = jnp.tanh(u + v + b)               # (B, T, A)
    score = (z @ fc_w.T + fc_b)[..., 0]   # (B, T)
    attn = jax.nn.softmax(score, axis=-1)
    context = jnp.einsum("bt,btd->bd", attn, Hj)[:, None, :]   # (B, 1, Denc)
    return context, attn


if __name__ == "__main__":
    # Small shapes consistent with the module's forward (non-aligned on purpose
    # to exercise T / batch padding and score masking).
    B, T = 16, 12
    dec_hidden_dim, enc_hidden_dim, attn_dim = 32, 48, 24

    key = jax.random.PRNGKey(0)
    ks = jax.random.split(key, 7)
    Si_1 = jax.random.normal(ks[0], (B, 1, dec_hidden_dim), dtype=jnp.float32)
    Hj = jax.random.normal(ks[1], (B, T, enc_hidden_dim), dtype=jnp.float32)

    # Parameter shapes follow torch nn.Linear: (out, in).
    W = jax.random.normal(ks[2], (attn_dim, dec_hidden_dim), dtype=jnp.float32) * 0.1
    V = jax.random.normal(ks[3], (attn_dim, enc_hidden_dim), dtype=jnp.float32) * 0.1
    b = jax.random.uniform(ks[4], (attn_dim,), dtype=jnp.float32)       # torch.rand
    fc_w = jax.random.normal(ks[5], (1, attn_dim), dtype=jnp.float32) * 0.1
    fc_b = jax.random.normal(ks[6], (1,), dtype=jnp.float32) * 0.1

    ctx_r, att_r = attention_ref(Si_1, Hj, W, V, b, fc_w, fc_b)

    # 1) Auto block size (T padded 12->16 with masking; multi-step grid).
    ctx, att = attention_pallas(Si_1, Hj, W, V, b, fc_w, fc_b)
    jax.block_until_ready((ctx, att))
    assert ctx.shape == (B, 1, enc_hidden_dim) and att.shape == (B, T)
    assert jnp.allclose(ctx, ctx_r, atol=2e-3, rtol=5e-3)
    assert jnp.allclose(att, att_r, atol=2e-3, rtol=5e-3)

    # 2) Explicit unaligned block_b (rounded up to 8) + non-divisible batch pad.
    c2, a2 = attention_pallas(Si_1[:5], Hj[:5], W, V, b, fc_w, fc_b, block_b=2)
    jax.block_until_ready((c2, a2))
    assert jnp.allclose(c2, ctx_r[:5], atol=2e-3, rtol=5e-3)
    assert jnp.allclose(a2, att_r[:5], atol=2e-3, rtol=5e-3)

    # 3) bf16 activations: halved HBM traffic, bf16 MXU / tanh with f32 accum.
    c3, a3 = attention_pallas(Si_1.astype(jnp.bfloat16), Hj.astype(jnp.bfloat16),
                              W, V, b, fc_w, fc_b)
    jax.block_until_ready((c3, a3))
    assert jnp.allclose(c3.astype(jnp.float32), ctx_r, atol=5e-2, rtol=5e-2)
    assert jnp.allclose(a3.astype(jnp.float32), att_r, atol=5e-2, rtol=5e-2)

    print("KERNEL_OK")
</pallas_src>

<mosaic_0001>
module attributes {stable_mosaic.version = 11 : i64} {
  func.func @attention_kernel(%arg0: i32, %arg1: memref<8x1x32xf32, #tpu.memory_space<vmem>>, %arg2: memref<8x16x48xf32, #tpu.memory_space<vmem>>, %arg3: memref<32x24xf32, #tpu.memory_space<vmem>>, %arg4: memref<48x24xf32, #tpu.memory_space<vmem>>, %arg5: memref<1x24xf32, #tpu.memory_space<vmem>>, %arg6: memref<1x24xf32, #tpu.memory_space<vmem>>, %arg7: memref<8x1x48xf32, #tpu.memory_space<vmem>>, %arg8: memref<8x16xf32, #tpu.memory_space<vmem>>) attributes {dimension_semantics = [#tpu.dimension_semantics<parallel>], iteration_bounds = array<i64: 2>, scalar_prefetch = 0 : i64, scratch_operands = 0 : i64, tpu.core_type = #tpu.core_type<tc>, window_params = [{transform_indices = @transform_0, window_bounds = array<i64: 8, 1, 32>}, {transform_indices = @transform_1, window_bounds = array<i64: 8, 16, 48>}, {pipeline_mode = #tpu.pipeline_mode<synchronous>, transform_indices = @transform_2, window_bounds = array<i64: 32, 24>}, {pipeline_mode = #tpu.pipeline_mode<synchronous>, transform_indices = @transform_3, window_bounds = array<i64: 48, 24>}, {pipeline_mode = #tpu.pipeline_mode<synchronous>, transform_indices = @transform_4, window_bounds = array<i64: 1, 24>}, {pipeline_mode = #tpu.pipeline_mode<synchronous>, transform_indices = @transform_5, window_bounds = array<i64: 1, 24>}, {transform_indices = @transform_6, window_bounds = array<i64: 8, 1, 48>}, {transform_indices = @transform_7, window_bounds = array<i64: 8, 16>}]} {
    %c0 = arith.constant 0 : index
    %c0_0 = arith.constant 0 : index
    %c0_1 = arith.constant 0 : index
    %0 = vector.load %arg2[%c0, %c0_0, %c0_1] : memref<8x16x48xf32, #tpu.memory_space<vmem>>, vector<8x16x48xf32>
    %1 = vector.shape_cast %0 : vector<8x16x48xf32> to vector<128x48xf32>
    %c0_2 = arith.constant 0 : index
    %c0_3 = arith.constant 0 : index
    %2 = vector.load %arg4[%c0_2, %c0_3] : memref<48x24xf32, #tpu.memory_space<vmem>>, vector<48x24xf32>
    %cst = arith.constant dense<0.000000e+00> : vector<128x24xf32>
    %3 = tpu.matmul %1, %2, %cst {dimension_numbers = #tpu.dot_dimension_numbers<[1], [0], [0], [1], [0, 0, 1, 1], [], []>} : vector<128x48xf32>, vector<48x24xf32>, vector<128x24xf32> -> vector<128x24xf32>
    %c0_4 = arith.constant 0 : index
    %c0_5 = arith.constant 0 : index
    %c0_6 = arith.constant 0 : index
    %4 = vector.load %arg1[%c0_4, %c0_5, %c0_6] : memref<8x1x32xf32, #tpu.memory_space<vmem>>, vector<8x1x32xf32>
    %5 = vector.shape_cast %4 : vector<8x1x32xf32> to vector<8x32xf32>
    %c0_7 = arith.constant 0 : index
    %c0_8 = arith.constant 0 : index
    %6 = vector.load %arg3[%c0_7, %c0_8] : memref<32x24xf32, #tpu.memory_space<vmem>>, vector<32x24xf32>
    %cst_9 = arith.constant dense<0.000000e+00> : vector<8x24xf32>
    %7 = tpu.matmul %5, %6, %cst_9 {dimension_numbers = #tpu.dot_dimension_numbers<[1], [0], [0], [1], [0, 0, 1, 1], [], []>} : vector<8x32xf32>, vector<32x24xf32>, vector<8x24xf32> -> vector<8x24xf32>
    %c0_10 = arith.constant 0 : index
    %c0_11 = arith.constant 0 : index
    %8 = vector.load %arg5[%c0_10, %c0_11] : memref<1x24xf32, #tpu.memory_space<vmem>>, vector<1x24xf32>
    %9 = vector.broadcast %8 : vector<1x24xf32> to vector<8x24xf32>
    %10 = arith.addf %7, %9 : vector<8x24xf32>
    %11 = vector.shape_cast %3 : vector<128x24xf32> to vector<8x16x24xf32>
    %12 = vector.shape_cast %10 : vector<8x24xf32> to vector<8x1x24xf32>
    %13 = vector.broadcast %12 : vector<8x1x24xf32> to vector<8x16x24xf32>
    %14 = arith.addf %11, %13 : vector<8x16x24xf32>
    %15 = math.tanh %14 : vector<8x16x24xf32>
    %c0_12 = arith.constant 0 : index
    %c0_13 = arith.constant 0 : index
    %16 = vector.load %arg6[%c0_12, %c0_13] : memref<1x24xf32, #tpu.memory_space<vmem>>, vector<1x24xf32>
    %17 = vector.shape_cast %16 : vector<1x24xf32> to vector<1x1x24xf32>
    %18 = vector.broadcast %17 : vector<1x1x24xf32> to vector<8x16x24xf32>
    %19 = arith.mulf %15, %18 : vector<8x16x24xf32>
    %cst_14 = arith.constant dense<0.000000e+00> : vector<8x16xf32>
    %20 = vector.multi_reduction <add>, %19, %cst_14 [2] : vector<8x16x24xf32> to vector<8x16xf32>
    %21 = tpu.iota {dimensions = array<i32: 1>} : vector<8x16xi32>
    %c12_i32 = arith.constant 12 : i32
    %22 = vector.broadcast %c12_i32 : i32 to vector<8x16xi32>
    %23 = arith.cmpi slt, %21, %22 : vector<8x16xi32>
    %cst_15 = arith.constant -1.000000e+30 : f32
    %24 = vector.broadcast %cst_15 : f32 to vector<8x16xf32>
    %25 = arith.select %23, %20, %24 : vector<8x16xi1>, vector<8x16xf32>
    %cst_16 = arith.constant dense<0xFF800000> : vector<8xf32>
    %26 = vector.multi_reduction <maximumf>, %25, %cst_16 [1] : vector<8x16xf32> to vector<8xf32>
    %27 = vector.shape_cast %26 : vector<8xf32> to vector<8x1xf32>
    %28 = vector.broadcast %27 : vector<8x1xf32> to vector<8x16xf32>
    %29 = arith.subf %25, %28 : vector<8x16xf32>
    %30 = math.exp %29 : vector<8x16xf32>
    %cst_17 = arith.constant dense<0.000000e+00> : vector<8xf32>
    %31 = vector.multi_reduction <add>, %30, %cst_17 [1] : vector<8x16xf32> to vector<8xf32>
    %32 = vector.shape_cast %31 : vector<8xf32> to vector<8x1xf32>
    %33 = tpu.reciprocal %32 {approx = true} : vector<8x1xf32> -> vector<8x1xf32>
    %34 = vector.broadcast %33 : vector<8x1xf32> to vector<8x16xf32>
    %35 = arith.mulf %30, %34 : vector<8x16xf32>
    %c0_18 = arith.constant 0 : index
    %c0_19 = arith.constant 0 : index
    %36 = vector.load %arg8[%c0_18, %c0_19] : memref<8x16xf32, #tpu.memory_space<vmem>>, vector<8x16xf32>
    tpu.vector_store %arg8[%c0_18, %c0_19], %35 {strides = array<i32>} : memref<8x16xf32, #tpu.memory_space<vmem>>, vector<8x16xf32>,
    %37 = vector.shape_cast %35 : vector<8x16xf32> to vector<8x16x1xf32>
    %38 = vector.broadcast %37 : vector<8x16x1xf32> to vector<8x16x48xf32>
    %39 = arith.mulf %38, %0 : vector<8x16x48xf32>
    %cst_20 = arith.constant dense<0.000000e+00> : vector<8x48xf32>
    %40 = vector.multi_reduction <add>, %39, %cst_20 [1] : vector<8x16x48xf32> to vector<8x48xf32>
    %41 = vector.shape_cast %40 : vector<8x48xf32> to vector<8x1x48xf32>
    %c0_21 = arith.constant 0 : index
    %c0_22 = arith.constant 0 : index
    %c0_23 = arith.constant 0 : index
    %42 = vector.load %arg7[%c0_21, %c0_22, %c0_23] : memref<8x1x48xf32, #tpu.memory_space<vmem>>, vector<8x1x48xf32>
    tpu.vector_store %arg7[%c0_21, %c0_22, %c0_23], %41 {strides = array<i32>} : memref<8x1x48xf32, #tpu.memory_space<vmem>>, vector<8x1x48xf32>,
    return
  }
  func.func @transform_0(%arg0: i32) -> (i32, i32, i32) {
    %c0_i32 = arith.constant 0 : i32
    %c0_i32_0 = arith.constant 0 : i32
    %c0_i32_1 = arith.constant 0 : i32
    return %arg0, %c0_i32, %c0_i32_0 : i32, i32, i32
  }
  func.func @transform_1(%arg0: i32) -> (i32, i32, i32) {
    %c0_i32 = arith.constant 0 : i32
    %c0_i32_0 = arith.constant 0 : i32
    %c0_i32_1 = arith.constant 0 : i32
    return %arg0, %c0_i32, %c0_i32_0 : i32, i32, i32
  }
  func.func @transform_2(%arg0: i32) -> (i32, i32) {
    %c0_i32 = arith.constant 0 : i32
    %c0_i32_0 = arith.constant 0 : i32
    %c0_i32_1 = arith.constant 0 : i32
    return %c0_i32, %c0_i32_0 : i32, i32
  }
  func.func @transform_3(%arg0: i32) -> (i32, i32) {
    %c0_i32 = arith.constant 0 : i32
    %c0_i32_0 = arith.constant 0 : i32
    %c0_i32_1 = arith.constant 0 : i32
    return %c0_i32, %c0_i32_0 : i32, i32
  }
  func.func @transform_4(%arg0: i32) -> (i32, i32) {
    %c0_i32 = arith.constant 0 : i32
    %c0_i32_0 = arith.constant 0 : i32
    %c0_i32_1 = arith.constant 0 : i32
    return %c0_i32, %c0_i32_0 : i32, i32
  }
  func.func @transform_5(%arg0: i32) -> (i32, i32) {
    %c0_i32 = arith.constant 0 : i32
    %c0_i32_0 = arith.constant 0 : i32
    %c0_i32_1 = arith.constant 0 : i32
    return %c0_i32, %c0_i32_0 : i32, i32
  }
  func.func @transform_6(%arg0: i32) -> (i32, i32, i32) {
    %c0_i32 = arith.constant 0 : i32
    %c0_i32_0 = arith.constant 0 : i32
    %c0_i32_1 = arith.constant 0 : i32
    return %arg0, %c0_i32, %c0_i32_0 : i32, i32, i32
  }
  func.func @transform_7(%arg0: i32) -> (i32, i32) {
    %c0_i32 = arith.constant 0 : i32
    %c0_i32_0 = arith.constant 0 : i32
    return %arg0, %c0_i32 : i32, i32
  }
}

</mosaic_0001>

<llo_original>
// kernel: attention_pallas.1
$region0: #{attention_pallas.1}
  #allocation0 [shape = 'u32[]', space=smem, size = 0x4, offset = 0x4, fixed_abs, tag = 'smem constant byte address 0x4 - core index']
  #allocation1 [shape = 'u32[144,128]{1,0:T(1,128)}', space=vmem, size = 0x12000, scoped, tag = 'internal scratch']
  %s0 = inlined_call_operand.vmem [shape: f32[16,1,32], index: 0, kind: input, shape index: {}]
  %s1 = inlined_call_operand.vmem [shape: f32[16,16,48], index: 1, kind: input, shape index: {}]
  %s2 = inlined_call_operand.vmem [shape: f32[32,24], index: 2, kind: input, shape index: {}]
  %s3 = inlined_call_operand.vmem [shape: f32[48,24], index: 3, kind: input, shape index: {}]
  %s4 = inlined_call_operand.vmem [shape: f32[1,24], index: 4, kind: input, shape index: {}]
  %s5 = inlined_call_operand.vmem [shape: f32[1,24], index: 5, kind: input, shape index: {}]
  %s6 = inlined_call_operand.hbm [shape: f32[16,1,48], index: 6, kind: output, shape index: {0}]
  %s7 = inlined_call_operand.hbm [shape: f32[16,16], index: 7, kind: output, shape index: {1}]
  %8 = xla_tuple %s6, %s7
  %s9 = sld [smem:[#allocation0]]
  $region65: #{attention_pallas.1} parent=0
    _
  %s11 = ssub.s32 1, %s9
  %s12 = scalar_select 0, %s11, %s9
  $region1: #{attention_pallas.1} parent=0
    #allocation2 [shape = 'u8[8192]{0}', space=vmem, size = 0x2000, scoped, tag = 'output window, operand 0']
    #allocation3 [shape = 's32[2]{0}', space=sflag, size = 0x8, scoped, tag = 'scoped memory for attention_pallas.1']
    #allocation4 [shape = 'u8[8192]{0}', space=vmem, size = 0x2000, scoped, tag = 'output window, operand 1']
    #allocation5 [shape = 's32[2]{0}', space=sflag, size = 0x8, scoped, tag = 'scoped memory for attention_pallas.1']
    %13 = vsyncpa [#allocation3], 0
    %s14 = scalar_lea.sflag [#allocation3], 1
    %15 = vsyncpa %s14, 0
    %16 = vsyncpa [#allocation5], 0
    %s17 = scalar_lea.sflag [#allocation5], 1
    %18 = vsyncpa %s17, 0
    loop: start=0, step=1, limit=4
    $region2: #{attention_pallas.1} parent=1 // loop_pre_header
      _
    $region3: #{attention_pallas.1} parent=1 // loop_header
      %s20 = sphi 0, %s24
      %p21 = scmp.ge.s32.totalorder %s20, 4
      %s30 = sphi 0, %s32
      %s33 = sphi 0, %s30
      %s34 = sphi 0, %s33
      %s50 = sphi 0, %s34
      %s56 = sphi 0, %s58
      %s59 = sphi 0, %s56
      %s60 = sphi 0, %s59
      %s76 = sphi 0, %s60
      %s80 = sphi 0, %s80
      %s82 = sphi 0, %s80
      %s83 = sphi 0, %s82
      %s97 = sphi 0, %s83
      %s101 = sphi 0, %s101
      %s103 = sphi 0, %s101
      %s104 = sphi 0, %s103
      %s118 = sphi 0, %s104
      %s122 = sphi 0, %s122
      %s124 = sphi 0, %s122
      %s125 = sphi 0, %s124
      %s139 = sphi 0, %s125
      %s143 = sphi 0, %s143
      %s145 = sphi 0, %s143
      %s146 = sphi 0, %s145
      %s160 = sphi 0, %s146
      %s166 = sphi 0, %s168
      %s169 = sphi 0, %s166
      %s170 = sphi 0, %s169
      %s186 = sphi 0, %s170
      %s192 = sphi 0, %s194
      %s195 = sphi 0, %s192
      %s196 = sphi 0, %s195
      %s212 = sphi 0, %s196
    $region4: #{attention_pallas.1} parent=1 // loop_header_branch
      %23 = sbr.rel (%p21) target = $region8
    $region5: #{attention_pallas.1} parent=1 // loop_body
      %s25 = ssub.s32 %s20, 1
      %s26 = ssub.s32 %s20, 2
      %s27 = sadd.s32 %s20, 1
      %s28 = ssub.s32 %s20, %s27
      %p29 = scmp.eq.s32.totalorder %s28, 0
      %s31 = sadd.s32 %s30, 1
      %s32 = scalar_select %p29, %s30, %s31
      %p35 = pneg %p29
      %p36 = scmp.eq.s32.totalorder %s20, 1
      %p37 = por %p35, %p36
      %p38 = scmp.ne.s32.totalorder %s30, %s33
      %p39 = scmp.eq.s32.totalorder %s20, 0
      %p40 = por %p38, %p39
      %p41 = scmp.ne.s32.totalorder %s30, %s33
      %p42 = scmp.eq.s32.totalorder %s25, 1
      %p43 = por %p41, %p42
      %p44 = scmp.ne.s32.totalorder %s33, %s34
      %p45 = scmp.eq.s32.totalorder %s25, 0
      %p46 = por %p44, %p45
      %p47 = scmp.ne.s32.totalorder %s33, %s34
      %p48 = scmp.eq.s32.totalorder %s26, 1
      %p49 = por %p47, %p48
      %p51 = scmp.ne.s32.totalorder %s34, %s50
      %p52 = scmp.eq.s32.totalorder %s26, 0
      %p53 = por %p51, %p52
      %s54 = ssub.s32 %s20, %s27
      %p55 = scmp.eq.s32.totalorder %s54, 0
      %s57 = sadd.s32 %s56, 1
      %s58 = scalar_select %p55, %s56, %s57
      %p61 = pneg %p55
      %p62 = scmp.eq.s32.totalorder %s20, 1
      %p63 = por %p61, %p62
      %p64 = scmp.ne.s32.totalorder %s56, %s59
      %p65 = scmp.eq.s32.totalorder %s20, 0
      %p66 = por %p64, %p65
      %p67 = scmp.ne.s32.totalorder %s56, %s59
      %p68 = scmp.eq.s32.totalorder %s25, 1
      %p69 = por %p67, %p68
      %p70 = scmp.ne.s32.totalorder %s59, %s60
      %p71 = scmp.eq.s32.totalorder %s25, 0
      %p72 = por %p70, %p71
      %p73 = scmp.ne.s32.totalorder %s59, %s60
      %p74 = scmp.eq.s32.totalorder %s26, 1
      %p75 = por %p73, %p74
      %p77 = scmp.ne.s32.totalorder %s60, %s76
      %p78 = scmp.eq.s32.totalorder %s26, 0
      %p79 = por %p77, %p78
      %s81 = sadd.s32 %s80, 1
      %p84 = scmp.eq.s32.totalorder %s20, 1
      %p85 = scmp.ne.s32.totalorder %s80, %s82
      %p86 = scmp.eq.s32.totalorder %s20, 0
      %p87 = por %p85, %p86
      %p88 = scmp.ne.s32.totalorder %s80, %s82
      %p89 = scmp.eq.s32.totalorder %s25, 1
      %p90 = por %p88, %p89
      %p91 = scmp.ne.s32.totalorder %s82, %s83
      %p92 = scmp.eq.s32.totalorder %s25, 0
      %p93 = por %p91, %p92
      %p94 = scmp.ne.s32.totalorder %s82, %s83
      %p95 = scmp.eq.s32.totalorder %s26, 1
      %p96 = por %p94, %p95
      %p98 = scmp.ne.s32.totalorder %s83, %s97
      %p99 = scmp.eq.s32.totalorder %s26, 0
      %p100 = por %p98, %p99
      %s102 = sadd.s32 %s101, 1
      %p105 = scmp.eq.s32.totalorder %s20, 1
      %p106 = scmp.ne.s32.totalorder %s101, %s103
      %p107 = scmp.eq.s32.totalorder %s20, 0
      %p108 = por %p106, %p107
      %p109 = scmp.ne.s32.totalorder %s101, %s103
      %p110 = scmp.eq.s32.totalorder %s25, 1
      %p111 = por %p109, %p110
      %p112 = scmp.ne.s32.totalorder %s103, %s104
      %p113 = scmp.eq.s32.totalorder %s25, 0
      %p114 = por %p112, %p113
      %p115 = scmp.ne.s32.totalorder %s103, %s104
      %p116 = scmp.eq.s32.totalorder %s26, 1
      %p117 = por %p115, %p116
      %p119 = scmp.ne.s32.totalorder %s104, %s118
      %p120 = scmp.eq.s32.totalorder %s26, 0
      %p121 = por %p119, %p120
      %s123 = sadd.s32 %s122, 1
      %p126 = scmp.eq.s32.totalorder %s20, 1
      %p127 = scmp.ne.s32.totalorder %s122, %s124
      %p128 = scmp.eq.s32.totalorder %s20, 0
      %p129 = por %p127, %p128
      %p130 = scmp.ne.s32.totalorder %s122, %s124
      %p131 = scmp.eq.s32.totalorder %s25, 1
      %p132 = por %p130, %p131
      %p133 = scmp.ne.s32.totalorder %s124, %s125
      %p134 = scmp.eq.s32.totalorder %s25, 0
      %p135 = por %p133, %p134
      %p136 = scmp.ne.s32.totalorder %s124, %s125
      %p137 = scmp.eq.s32.totalorder %s26, 1
      %p138 = por %p136, %p137
      %p140 = scmp.ne.s32.totalorder %s125, %s139
      %p141 = scmp.eq.s32.totalorder %s26, 0
      %p142 = por %p140, %p141
      %s144 = sadd.s32 %s143, 1
      %p147 = scmp.eq.s32.totalorder %s20, 1
      %p148 = scmp.ne.s32.totalorder %s143, %s145
      %p149 = scmp.eq.s32.totalorder %s20, 0
      %p150 = por %p148, %p149
      %p151 = scmp.ne.s32.totalorder %s143, %s145
      %p152 = scmp.eq.s32.totalorder %s25, 1
      %p153 = por %p151, %p152
      %p154 = scmp.ne.s32.totalorder %s145, %s146
      %p155 = scmp.eq.s32.totalorder %s25, 0
      %p156 = por %p154, %p155
      %p157 = scmp.ne.s32.totalorder %s145, %s146
      %p158 = scmp.eq.s32.totalorder %s26, 1
      %p159 = por %p157, %p158
      %p161 = scmp.ne.s32.totalorder %s146, %s160
      %p162 = scmp.eq.s32.totalorder %s26, 0
      %p163 = por %p161, %p162
      %s164 = ssub.s32 %s20, %s27
      %p165 = scmp.eq.s32.totalorder %s164, 0
      %s167 = sadd.s32 %s166, 1
      %s168 = scalar_select %p165, %s166, %s167
      %p171 = pneg %p165
      %p172 = scmp.eq.s32.totalorder %s20, 1
      %p173 = por %p171, %p172
      %p174 = scmp.ne.s32.totalorder %s166, %s169
      %p175 = scmp.eq.s32.totalorder %s20, 0
      %p176 = por %p174, %p175
      %p177 = scmp.ne.s32.totalorder %s166, %s169
      %p178 = scmp.eq.s32.totalorder %s25, 1
      %p179 = por %p177, %p178
      %p180 = scmp.ne.s32.totalorder %s169, %s170
      %p181 = scmp.eq.s32.totalorder %s25, 0
      %p182 = por %p180, %p181
      %p183 = scmp.ne.s32.totalorder %s169, %s170
      %p184 = scmp.eq.s32.totalorder %s26, 1
      %p185 = por %p183, %p184
      %p187 = scmp.ne.s32.totalorder %s170, %s186
      %p188 = scmp.eq.s32.totalorder %s26, 0
      %p189 = por %p187, %p188
      %s190 = ssub.s32 %s20, %s27
      %p191 = scmp.eq.s32.totalorder %s190, 0
      %s193 = sadd.s32 %s192, 1
      %s194 = scalar_select %p191, %s192, %s193
      %p197 = pneg %p191
      %p198 = scmp.eq.s32.totalorder %s20, 1
      %p199 = por %p197, %p198
      %p200 = scmp.ne.s32.totalorder %s192, %s195
      %p201 = scmp.eq.s32.totalorder %s20, 0
      %p202 = por %p200, %p201
      %p203 = scmp.ne.s32.totalorder %s192, %s195
      %p204 = scmp.eq.s32.totalorder %s25, 1
      %p205 = por %p203, %p204
      %p206 = scmp.ne.s32.totalorder %s195, %s196
      %p207 = scmp.eq.s32.totalorder %s25, 0
      %p208 = por %p206, %p207
      %p209 = scmp.ne.s32.totalorder %s195, %s196
      %p210 = scmp.eq.s32.totalorder %s26, 1
      %p211 = por %p209, %p210
      %p213 = scmp.ne.s32.totalorder %s196, %s212
      %p214 = scmp.eq.s32.totalorder %s26, 0
      %p215 = por %p213, %p214
      %p216 = scmp.le.s32.totalorder 1, %s20
      %p217 = scmp.lt.s32.totalorder %s20, 3
      %p218 = pnand %p216, %p217
      %p219 = pneg %p218
      // Predicated region
      $region9: #{attention_pallas.1} parent=5 // pred_check
        _
      $region10: #{attention_pallas.1} parent=5 // pred_check_branch
        %221 = sbr.rel (%p218) target = $region12
      $region11: #{attention_pallas.1} parent=5 // pred_region
        %s222 = ssub.s32 %s20, 1
        // Predicated region
        $region13: #{attention_pallas.1} parent=11 // pred_check
          %p223 = pneg %p93
        $region14: #{attention_pallas.1} parent=11 // pred_check_branch
          %225 = sbr.rel (%p223) target = $region16
        $region15: #{attention_pallas.1} parent=11 // pred_region
          _
        $region16: #{attention_pallas.1} parent=11 // pred_fallthru
          _
        // Predicated region
        $region17: #{attention_pallas.1} parent=11 // pred_check
          %p226 = pneg %p114
        $region18: #{attention_pallas.1} parent=11 // pred_check_branch
          %228 = sbr.rel (%p226) target = $region20
        $region19: #{attention_pallas.1} parent=11 // pred_region
          _
        $region20: #{attention_pallas.1} parent=11 // pred_fallthru
          _
        // Predicated region
        $region21: #{attention_pallas.1} parent=11 // pred_check
          %p229 = pneg %p135
        $region22: #{attention_pallas.1} parent=11 // pred_check_branch
          %231 = sbr.rel (%p229) target = $region24
        $region23: #{attention_pallas.1} parent=11 // pred_region
          _
        $region24: #{attention_pallas.1} parent=11 // pred_fallthru
          _
        // Predicated region
        $region25: #{attention_pallas.1} parent=11 // pred_check
          %p232 = pneg %p156
        $region26: #{attention_pallas.1} parent=11 // pred_check_branch
          %234 = sbr.rel (%p232) target = $region28
        $region27: #{attention_pallas.1} parent=11 // pred_region
          _
        $region28: #{attention_pallas.1} parent=11 // pred_fallthru
          _
      $region12: #{attention_pallas.1} parent=5 // pred_fallthru
        _
      %p235 = scmp.lt.s32.totalorder %s20, 2
      // Predicated region
      $region29: #{attention_pallas.1} parent=5 // pred_check
        %p236 = pneg %p235
      $region30: #{attention_pallas.1} parent=5 // pred_check_branch
        %238 = sbr.rel (%p236) target = $region32
      $region31: #{attention_pallas.1} parent=5 // pred_region
        // Predicated region
        $region33: #{attention_pallas.1} parent=31 // pred_check
          %p239 = pneg %p40
        $region34: #{attention_pallas.1} parent=31 // pred_check_branch
          %241 = sbr.rel (%p239) target = $region36
        $region35: #{attention_pallas.1} parent=31 // pred_region
          %s242 = smul.u32 8, %s20
          %p243 = scmp.lt.s32.totalorder %s242, 15
          %s244 = scalar_select %p243, %s242, 15
          %s245 = scalar_lea.vmem %s0, %s244
          %s246 = smul.u32 8, %s20
        $region36: #{attention_pallas.1} parent=31 // pred_fallthru
          _
        // Predicated region
        $region37: #{attention_pallas.1} parent=31 // pred_check
          %p247 = pneg %p66
        $region38: #{attention_pallas.1} parent=31 // pred_check_branch
          %249 = sbr.rel (%p247) target = $region40
        $region39: #{attention_pallas.1} parent=31 // pred_region
          %s250 = smul.u32 8, %s20
          %p251 = scmp.lt.s32.totalorder %s250, 15
          %s252 = scalar_select %p251, %s250, 15
          %s253 = smul.addr %s252, 2
          %s254 = smul.addr %s253, 8
          %s255 = scalar_lea.vmem %s1, %s254
          %s256 = smul.u32 8, %s20
        $region40: #{attention_pallas.1} parent=31 // pred_fallthru
          _
      $region32: #{attention_pallas.1} parent=5 // pred_fallthru
        _
      %p257 = scmp.le.s32.totalorder 1, %s20
      %p258 = scmp.lt.s32.totalorder %s20, 3
      %p259 = pnand %p257, %p258
      %p260 = pneg %p259
      // Predicated region
      $region41: #{attention_pallas.1} parent=5 // pred_check
        _
      $region42: #{attention_pallas.1} parent=5 // pred_check_branch
        %262 = sbr.rel (%p259) target = $region44
      $region43: #{attention_pallas.1} parent=5 // pred_region
        %s263 = ssub.s32 %s20, 1
        %s264 = smul.u32 8, %s25
        %p265 = scmp.lt.s32.totalorder %s264, 15
        %s266 = scalar_select %p265, %s264, 15
        %s267 = scalar_lea.vmem %s0, %s266
        %p268 = pneg %p46
        %p269 = pneg %p43
        %s270 = smul.u32 8, %s25
        %p271 = scmp.lt.s32.totalorder %s270, 15
        %s272 = scalar_select %p271, %s270, 15
        %s273 = smul.addr %s272, 2
        %s274 = smul.addr %s273, 8
        %s275 = scalar_lea.vmem %s1, %s274
        %p276 = pneg %p72
        %p277 = pneg %p69
        %p278 = pneg %p93
        %p279 = pneg %p90
        %p280 = pneg %p114
        %p281 = pneg %p111
        %p282 = pneg %p135
        %p283 = pneg %p132
        %p284 = pneg %p156
        %p285 = pneg %p153
        %p286 = pneg %p182
        %p287 = pneg %p179
        %s288 = sand.u32 %s169, 1
        %s289 = scalar_lea.sflag [#allocation3], %s288
        %s290 = sand.u32 %s169, 1
        %s291 = smul.addr %s290, 8
        %s292 = scalar_lea.vmem [#allocation2], %s291
        %p293 = pneg %p208
        %p294 = pneg %p205
        %s295 = sand.u32 %s195, 1
        %s296 = scalar_lea.sflag [#allocation5], %s295
        %s297 = sand.u32 %s195, 1
        %s298 = smul.addr %s297, 8
        %s299 = scalar_lea.vmem [#allocation4], %s298
        %s300 = smul.u32 8, %s25
        %p301 = scmp.lt.s32.totalorder %s300, 15
        %s302 = scalar_select %p301, %s300, 15
        %s303 = scalar_lea.vmem %s0, %s302
        %s304 = smul.u32 8, %s25
        %s305 = smul.u32 8, %s25
        %p306 = scmp.lt.s32.totalorder %s305, 15
        %s307 = scalar_select %p306, %s305, 15
        %s308 = smul.addr %s307, 2
        %s309 = smul.addr %s308, 8
        %s310 = scalar_lea.vmem %s1, %s309
        %s311 = smul.u32 8, %s25
        %s312 = smul.u32 8, %s25
        %v313 = vld [vmem:[%s310] sm:$0xff]
        %v314 = vld [vmem:[%s310 + $0x8] sm:$0xff]
        %v315 = vld [vmem:[%s310 + $0x10] sm:$0xff]
        %v316 = vld [vmem:[%s310 + $0x18] sm:$0xff]
        %v317 = vld [vmem:[%s310 + $0x20] sm:$0xff]
        %v318 = vld [vmem:[%s310 + $0x28] sm:$0xff]
        %v319 = vld [vmem:[%s310 + $0x30] sm:$0xff]
        %v320 = vld [vmem:[%s310 + $0x38] sm:$0xff]
        %v321 = vld [vmem:[%s310 + $0x40] sm:$0xff]
        %v322 = vld [vmem:[%s310 + $0x48] sm:$0xff]
        %v323 = vld [vmem:[%s310 + $0x50] sm:$0xff]
        %v324 = vld [vmem:[%s310 + $0x58] sm:$0xff]
        %v325 = vld [vmem:[%s310 + $0x60] sm:$0xff]
        %v326 = vld [vmem:[%s310 + $0x68] sm:$0xff]
        %v327 = vld [vmem:[%s310 + $0x70] sm:$0xff]
        %v328 = vld [vmem:[%s310 + $0x78] sm:$0xff]
        %v329 = vld [vmem:[%s3] sm:$0xff]
        %v330 = vld [vmem:[%s3 + $0x8] sm:$0xff]
        %v331 = vld [vmem:[%s3 + $0x10] sm:$0xff]
        %v332 = vld [vmem:[%s3 + $0x18] sm:$0xff]
        %v333 = vld [vmem:[%s3 + $0x20] sm:$0xff]
        %v334 = vld [vmem:[%s3 + $0x28] sm:$0xff]
        %vm335 = vcmask 392192
        %v337 = vsel %vm335, %v313, 0
        %v340 = vsel %vm335, %v314, 0
        %v343 = vsel %vm335, %v315, 0
        %v346 = vsel %vm335, %v316, 0
        %v349 = vsel %vm335, %v317, 0
        %v352 = vsel %vm335, %v318, 0
        %v355 = vsel %vm335, %v319, 0
        %v358 = vsel %vm335, %v320, 0
        %v361 = vsel %vm335, %v321, 0
        %v364 = vsel %vm335, %v322, 0
        %v367 = vsel %vm335, %v323, 0
        %v370 = vsel %vm335, %v324, 0
        %v373 = vsel %vm335, %v325, 0
        %v376 = vsel %vm335, %v326, 0
        %v379 = vsel %vm335, %v327, 0
        %v382 = vsel %vm335, %v328, 0
        %384 = vmatprep.subr.mxu0 0.0
        %385 = vmatpush1.msra.mxu0 %v329
        %386 = vmatprep.subr.mxu0 0.0
        %387 = vmatpush1.msra.mxu0 %v330
        %388 = vmatprep.subr.mxu0 0.0
        %389 = vmatpush1.msra.mxu0 %v331
        %390 = vmatprep.subr.mxu0 0.0
        %391 = vmatpush1.msra.mxu0 %v332
        %392 = vmatprep.subr.mxu0 0.0
        %393 = vmatpush1.msra.mxu0 %v333
        %394 = vmatprep.subr.mxu0 0.0
        %395 = vmatpush1.msra.mxu0 %v334
        %396 = vmatprep.subr.mxu0 0.0
        %397 = vmatpush1.msra.mxu0 0.0
        %398 = vmatprep.subr.mxu0 0.0
        %399 = vmatpush1.msra.mxu0 0.0
        %400 = vmatprep.subr.mxu0 0.0
        %401 = vmatpush1.msra.mxu0 0.0
        %402 = vmatprep.subr.mxu0 0.0
        %403 = vmatpush1.msra.mxu0 0.0
        %404 = vmatprep.subr.mxu0 0.0
        %405 = vmatpush1.msra.mxu0 0.0
        %406 = vmatprep.subr.mxu0 0.0
        %407 = vmatpush1.msra.mxu0 0.0
        %408 = vmatprep.subr.mxu0 0.0
        %409 = vmatpush1.msra.mxu0 0.0
        %410 = vmatprep.subr.mxu0 0.0
        %411 = vmatpush1.msra.mxu0 0.0
        %412 = vmatprep.subr.mxu0 0.0
        %413 = vmatpush1.msra.mxu0 0.0
        %414 = vmatprep.subr.mxu0 0.0
        %415 = vmatpush1.msra.mxu0 0.0
        %416 = vmatprep.subr.mxu0 0.0
        %417 = vmatpush1.msra.mxu0 0.0
        %418 = vmatprep.subr.mxu0 0.0
        %419 = vmatpush1.msra.mxu0 0.0
        %420 = vmatprep.subr.mxu0 0.0
        %421 = vmatpush1.msra.mxu0 0.0
        %422 = vmatprep.subr.mxu0 0.0
        %423 = vmatpush1.msra.mxu0 0.0
        %424 = vmatprep.subr.mxu0 0.0
        %425 = vmatpush1.msra.mxu0 0.0
        %426 = vmatprep.subr.mxu0 0.0
        %427 = vmatpush1.msra.mxu0 0.0
        %428 = vmatprep.subr.mxu0 0.0
        %429 = vmatpush1.msra.mxu0 0.0
        %430 = vmatprep.subr.mxu0 0.0
        %431 = vmatpush1.msra.mxu0 0.0
        %432 = vmatprep.subr.mxu0 0.0
        %433 = vmatpush1.msra.mxu0 0.0
        %434 = vmatprep.subr.mxu0 0.0
        %435 = vmatpush1.msra.mxu0 0.0
        %436 = vmatprep.subr.mxu0 0.0
        %437 = vmatpush1.msra.mxu0 0.0
        %438 = vmatprep.subr.mxu0 0.0
        %439 = vmatpush1.msra.mxu0 0.0
        %440 = vmatprep.subr.mxu0 0.0
        %441 = vmatpush1.msra.mxu0 0.0
        %442 = vmatprep.subr.mxu0 0.0
        %443 = vmatpush1.msra.mxu0 0.0
        %444 = vmatprep.subr.mxu0 0.0
        %445 = vmatpush1.msra.mxu0 0.0
        %446 = vmatprep.subr.mxu0 0.0
        %447 = vmatpush1.msra.mxu0 0.0
        %448 = vmatprep.mubr.f32.mxu0 0.0
        %449 = vmatmul.mubr.f32.gmra.mrb[0].mxu0 %v337
        %v450 = vpop.f32.mrb[0].mxu0
        %v451 = vadd.f32 0.0, %v450
        %v452 = vpop.f32.mrb[0].mxu0
        %453 = vmatprep.mubr.f32.mxu0 0.0
        %454 = vmatmul.mubr.f32.gmra.mrb[0].mxu0 %v340
        %v455 = vpop.f32.mrb[0].mxu0
        %v456 = vadd.f32 0.0, %v455
        %v457 = vpop.f32.mrb[0].mxu0
        %458 = vmatprep.mubr.f32.mxu0 0.0
        %459 = vmatmul.mubr.f32.gmra.mrb[0].mxu0 %v343
        %v460 = vpop.f32.mrb[0].mxu0
        %v461 = vadd.f32 0.0, %v460
        %v462 = vpop.f32.mrb[0].mxu0
        %463 = vmatprep.mubr.f32.mxu0 0.0
        %464 = vmatmul.mubr.f32.gmra.mrb[0].mxu0 %v346
        %v465 = vpop.f32.mrb[0].mxu0
        %v466 = vadd.f32 0.0, %v465
        %v467 = vpop.f32.mrb[0].mxu0
        %468 = vmatprep.mubr.f32.mxu0 0.0
        %469 = vmatmul.mubr.f32.gmra.mrb[0].mxu0 %v349
        %v470 = vpop.f32.mrb[0].mxu0
        %v471 = vadd.f32 0.0, %v470
        %v472 = vpop.f32.mrb[0].mxu0
        %473 = vmatprep.mubr.f32.mxu0 0.0
        %474 = vmatmul.mubr.f32.gmra.mrb[0].mxu0 %v352
        %v475 = vpop.f32.mrb[0].mxu0
        %v476 = vadd.f32 0.0, %v475
        %v477 = vpop.f32.mrb[0].mxu0
        %478 = vmatprep.mubr.f32.mxu0 0.0
        %479 = vmatmul.mubr.f32.gmra.mrb[0].mxu0 %v355
        %v480 = vpop.f32.mrb[0].mxu0
        %v481 = vadd.f32 0.0, %v480
        %v482 = vpop.f32.mrb[0].mxu0
        %483 = vmatprep.mubr.f32.mxu0 0.0
        %484 = vmatmul.mubr.f32.gmra.mrb[0].mxu0 %v358
        %v485 = vpop.f32.mrb[0].mxu0
        %v486 = vadd.f32 0.0, %v485
        %v487 = vpop.f32.mrb[0].mxu0
        %488 = vmatprep.mubr.f32.mxu0 0.0
        %489 = vmatmul.mubr.f32.gmra.mrb[0].mxu0 %v361
        %v490 = vpop.f32.mrb[0].mxu0
        %v491 = vadd.f32 0.0, %v490
        %v492 = vpop.f32.mrb[0].mxu0
        %493 = vmatprep.mubr.f32.mxu0 0.0
        %494 = vmatmul.mubr.f32.gmra.mrb[0].mxu0 %v364
        %v495 = vpop.f32.mrb[0].mxu0
        %v496 = vadd.f32 0.0, %v495
        %v497 = vpop.f32.mrb[0].mxu0
        %498 = vmatprep.mubr.f32.mxu0 0.0
        %499 = vmatmul.mubr.f32.gmra.mrb[0].mxu0 %v367
        %v500 = vpop.f32.mrb[0].mxu0
        %v501 = vadd.f32 0.0, %v500
        %v502 = vpop.f32.mrb[0].mxu0
        %503 = vmatprep.mubr.f32.mxu0 0.0
        %504 = vmatmul.mubr.f32.gmra.mrb[0].mxu0 %v370
        %v505 = vpop.f32.mrb[0].mxu0
        %v506 = vadd.f32 0.0, %v505
        %v507 = vpop.f32.mrb[0].mxu0
        %508 = vmatprep.mubr.f32.mxu0 0.0
        %509 = vmatmul.mubr.f32.gmra.mrb[0].mxu0 %v373
        %v510 = vpop.f32.mrb[0].mxu0
        %v511 = vadd.f32 0.0, %v510
        %v512 = vpop.f32.mrb[0].mxu0
        %513 = vmatprep.mubr.f32.mxu0 0.0
        %514 = vmatmul.mubr.f32.gmra.mrb[0].mxu0 %v376
        %v515 = vpop.f32.mrb[0].mxu0
        %v516 = vadd.f32 0.0, %v515
        %v517 = vpop.f32.mrb[0].mxu0
        %518 = vmatprep.mubr.f32.mxu0 0.0
        %519 = vmatmul.mubr.f32.gmra.mrb[0].mxu0 %v379
        %v520 = vpop.f32.mrb[0].mxu0
        %v521 = vadd.f32 0.0, %v520
        %v522 = vpop.f32.mrb[0].mxu0
        %523 = vmatprep.mubr.f32.mxu0 0.0
        %524 = vmatmul.mubr.f32.gmra.mrb[0].mxu0 %v382
        %v525 = vpop.f32.mrb[0].mxu0
        %v526 = vadd.f32 0.0, %v525
        %v527 = vpop.f32.mrb[0].mxu0
        %528 = vdwg.mxu0
        %v529 = vld [vmem:[%s303] sm:$0x1]
        %v530 = vld [vmem:[%s303 + $0x1] sm:$0x1]
        %v531 = vld [vmem:[%s303 + $0x2] sm:$0x1]
        %v532 = vld [vmem:[%s303 + $0x3] sm:$0x1]
        %v533 = vld [vmem:[%s303 + $0x4] sm:$0x1]
        %v534 = vld [vmem:[%s303 + $0x5] sm:$0x1]
        %v535 = vld [vmem:[%s303 + $0x6] sm:$0x1]
        %v536 = vld [vmem:[%s303 + $0x7] sm:$0x1]
        %v537 = vld [vmem:[%s2] sm:$0xff]
        %v538 = vld [vmem:[%s2 + $0x8] sm:$0xff]
        %v539 = vld [vmem:[%s2 + $0x10] sm:$0xff]
        %v540 = vld [vmem:[%s2 + $0x18] sm:$0xff]
        %v541 = vld [vmem:[%s4] sm:$0x1]
        %v543 = vlaneseq
        %v544 = vshrl.u32 %v543, 7
        %v545 = vsub.s32 0, %v544
        %v546 = vrot.slane %v541, %v545
        %v556 = vcombine.low %v529, %v530
        %v557 = vcombine.low %v531, %v532
        %v558 = vcombine.low %v533, %v534
        %v559 = vcombine.low %v535, %v536
        %v561 = vunpack.c.l.s4 1966171168
        %v562 = vunpack.c.0.s8 %v561
        %v563 = vlaneseq
        %v564 = vshrl.u32 %v563, 7
        %v565 = vsub.s32 %v562, %v564
        %v566 = vrot.slane %v556, %v565
        %v568 = vunpack.c.l.s4 1966171168
        %v569 = vunpack.c.0.s8 %v568
        %v570 = vlaneseq
        %v571 = vshrl.u32 %v570, 7
        %v572 = vsub.s32 %v569, %v571
        %v573 = vrot.slane %v557, %v572
        %v575 = vunpack.c.l.s4 1966171168
        %v576 = vunpack.c.0.s8 %v575
        %v577 = vlaneseq
        %v578 = vshrl.u32 %v577, 7
        %v579 = vsub.s32 %v576, %v578
        %v580 = vrot.slane %v558, %v579
        %v582 = vunpack.c.l.s4 1966171168
        %v583 = vunpack.c.0.s8 %v582
        %v584 = vlaneseq
        %v585 = vshrl.u32 %v584, 7
        %v586 = vsub.s32 %v583, %v585
        %v587 = vrot.slane %v559, %v586
        %v588 = vcombine.low %v566, %v573
        %v589 = vcombine.low %v580, %v587
        %v591 = vunpack.c.l.s4 1966171168
        %v592 = vunpack.c.0.s8 %v591
        %v593 = vlaneseq
        %v594 = vshrl.u32 %v593, 7
        %v595 = vsub.s32 %v592, %v594
        %v596 = vrot.slane %v588, %v595
        %v598 = vunpack.c.l.s4 1966171168
        %v599 = vunpack.c.0.s8 %v598
        %v600 = vlaneseq
        %v601 = vshrl.u32 %v600, 7
        %v602 = vsub.s32 %v599, %v601
        %v603 = vrot.slane %v589, %v602
        %v604 = vcombine.low %v596, %v603
        %vm605 = vcmask 261120
        %v606 = vsel %vm605, %v604, 0
        %608 = vmatprep.subr.mxu0 0.0
        %609 = vmatpush1.msra.mxu0 %v537
        %610 = vmatprep.subr.mxu0 0.0
        %611 = vmatpush1.msra.mxu0 %v538
        %612 = vmatprep.subr.mxu0 0.0
        %613 = vmatpush1.msra.mxu0 %v539
        %614 = vmatprep.subr.mxu0 0.0
        %615 = vmatpush1.msra.mxu0 %v540
        %616 = vmatprep.subr.mxu0 0.0
        %617 = vmatpush1.msra.mxu0 0.0
        %618 = vmatprep.subr.mxu0 0.0
        %619 = vmatpush1.msra.mxu0 0.0
        %620 = vmatprep.subr.mxu0 0.0
        %621 = vmatpush1.msra.mxu0 0.0
        %622 = vmatprep.subr.mxu0 0.0
        %623 = vmatpush1.msra.mxu0 0.0
        %624 = vmatprep.subr.mxu0 0.0
        %625 = vmatpush1.msra.mxu0 0.0
        %626 = vmatprep.subr.mxu0 0.0
        %627 = vmatpush1.msra.mxu0 0.0
        %628 = vmatprep.subr.mxu0 0.0
        %629 = vmatpush1.msra.mxu0 0.0
        %630 = vmatprep.subr.mxu0 0.0
        %631 = vmatpush1.msra.mxu0 0.0
        %632 = vmatprep.subr.mxu0 0.0
        %633 = vmatpush1.msra.mxu0 0.0
        %634 = vmatprep.subr.mxu0 0.0
        %635 = vmatpush1.msra.mxu0 0.0
        %636 = vmatprep.subr.mxu0 0.0
        %637 = vmatpush1.msra.mxu0 0.0
        %638 = vmatprep.subr.mxu0 0.0
        %639 = vmatpush1.msra.mxu0 0.0
        %640 = vmatprep.subr.mxu0 0.0
        %641 = vmatpush1.msra.mxu0 0.0
        %642 = vmatprep.subr.mxu0 0.0
        %643 = vmatpush1.msra.mxu0 0.0
        %644 = vmatprep.subr.mxu0 0.0
        %645 = vmatpush1.msra.mxu0 0.0
        %646 = vmatprep.subr.mxu0 0.0
        %647 = vmatpush1.msra.mxu0 0.0
        %648 = vmatprep.subr.mxu0 0.0
        %649 = vmatpush1.msra.mxu0 0.0
        %650 = vmatprep.subr.mxu0 0.0
        %651 = vmatpush1.msra.mxu0 0.0
        %652 = vmatprep.subr.mxu0 0.0
        %653 = vmatpush1.msra.mxu0 0.0
        %654 = vmatprep.subr.mxu0 0.0
        %655 = vmatpush1.msra.mxu0 0.0
        %656 = vmatprep.subr.mxu0 0.0
        %657 = vmatpush1.msra.mxu0 0.0
        %658 = vmatprep.subr.mxu0 0.0
        %659 = vmatpush1.msra.mxu0 0.0
        %660 = vmatprep.subr.mxu0 0.0
        %661 = vmatpush1.msra.mxu0 0.0
        %662 = vmatprep.subr.mxu0 0.0
        %663 = vmatpush1.msra.mxu0 0.0
        %664 = vmatprep.subr.mxu0 0.0
        %665 = vmatpush1.msra.mxu0 0.0
        %666 = vmatprep.subr.mxu0 0.0
        %667 = vmatpush1.msra.mxu0 0.0
        %668 = vmatprep.subr.mxu0 0.0
        %669 = vmatpush1.msra.mxu0 0.0
        %670 = vmatprep.subr.mxu0 0.0
        %671 = vmatpush1.msra.mxu0 0.0
        %672 = vmatprep.mubr.f32.mxu0 0.0
        %673 = vmatmul.mubr.f32.gmra.mrb[0].mxu0 %v606
        %v674 = vpop.f32.mrb[0].mxu0
        %v675 = vadd.f32 %v546, %v674
        %v676 = vpop.f32.mrb[0].mxu0
        %677 = vdwg.mxu0
        %v679 = vcombine.high %v675, %v675
        %v681 = vunpack.c.l.s4 1966171168
        %v682 = vunpack.c.0.s8 %v681
        %v683 = vlaneseq
        %v684 = vshrl.u32 %v683, 7
        %v685 = vsub.s32 %v682, %v684
        %v686 = vrot.slane %v675, %v685
        %v688 = vunpack.c.l.s4 1966171168
        %v689 = vunpack.c.0.s8 %v688
        %v690 = vlaneseq
        %v691 = vshrl.u32 %v690, 7
        %v692 = vsub.s32 %v689, %v691
        %v693 = vrot.slane %v679, %v692
        %v694 = vcombine.high %v686, %v686
        %v695 = vcombine.high %v693, %v693
        %v697 = vunpack.c.l.s4 1966171168
        %v698 = vunpack.c.0.s8 %v697
        %v699 = vlaneseq
        %v700 = vshrl.u32 %v699, 7
        %v701 = vsub.s32 %v698, %v700
        %v702 = vrot.slane %v686, %v701
        %v704 = vunpack.c.l.s4 1966171168
        %v705 = vunpack.c.0.s8 %v704
        %v706 = vlaneseq
        %v707 = vshrl.u32 %v706, 7
        %v708 = vsub.s32 %v705, %v707
        %v709 = vrot.slane %v693, %v708
        %v711 = vunpack.c.l.s4 1966171168
        %v712 = vunpack.c.0.s8 %v711
        %v713 = vlaneseq
        %v714 = vshrl.u32 %v713, 7
        %v715 = vsub.s32 %v712, %v714
        %v716 = vrot.slane %v694, %v715
        %v718 = vunpack.c.l.s4 1966171168
        %v719 = vunpack.c.0.s8 %v718
        %v720 = vlaneseq
        %v721 = vshrl.u32 %v720, 7
        %v722 = vsub.s32 %v719, %v721
        %v723 = vrot.slane %v695, %v722
        %v724 = vcombine.high %v702, %v702
        %v725 = vcombine.high %v709, %v709
        %v726 = vcombine.high %v716, %v716
        %v727 = vcombine.high %v723, %v723
        %v728 = vlaneseq
        %v729 = vshrl.u32 %v728, 7
        %v730 = vsub.s32 0, %v729
        %v731 = vrot.slane %v702, %v730
        %v732 = vlaneseq
        %v733 = vshrl.u32 %v732, 7
        %v734 = vsub.s32 0, %v733
        %v735 = vrot.slane %v716, %v734
        %v736 = vlaneseq
        %v737 = vshrl.u32 %v736, 7
        %v738 = vsub.s32 0, %v737
        %v739 = vrot.slane %v724, %v738
        %v740 = vlaneseq
        %v741 = vshrl.u32 %v740, 7
        %v742 = vsub.s32 0, %v741
        %v743 = vrot.slane %v726, %v742
        %v744 = vlaneseq
        %v745 = vshrl.u32 %v744, 7
        %v746 = vsub.s32 0, %v745
        %v747 = vrot.slane %v709, %v746
        %v748 = vlaneseq
        %v749 = vshrl.u32 %v748, 7
        %v750 = vsub.s32 0, %v749
        %v751 = vrot.slane %v723, %v750
        %v752 = vlaneseq
        %v753 = vshrl.u32 %v752, 7
        %v754 = vsub.s32 0, %v753
        %v755 = vrot.slane %v725, %v754
        %v756 = vlaneseq
        %v757 = vshrl.u32 %v756, 7
        %v758 = vsub.s32 0, %v757
        %v759 = vrot.slane %v727, %v758
        %v768 = vadd.f32 %v451, %v731
        %v769 = vadd.f32 %v456, %v731
        %v770 = vadd.f32 %v461, %v735
        %v771 = vadd.f32 %v466, %v735
        %v772 = vadd.f32 %v471, %v739
        %v773 = vadd.f32 %v476, %v739
        %v774 = vadd.f32 %v481, %v743
        %v775 = vadd.f32 %v486, %v743
        %v776 = vadd.f32 %v491, %v747
        %v777 = vadd.f32 %v496, %v747
        %v778 = vadd.f32 %v501, %v751
        %v779 = vadd.f32 %v506, %v751
        %v780 = vadd.f32 %v511, %v755
        %v781 = vadd.f32 %v516, %v755
        %v782 = vadd.f32 %v521, %v759
        %v783 = vadd.f32 %v526, %v759
        %v784 = vtanh.pop %v768
        %v785 = vtanh.pop %v769
        %v786 = vtanh.pop %v770
        %v787 = vtanh.pop %v771
        %v788 = vtanh.pop %v772
        %v789 = vtanh.pop %v773
        %v790 = vtanh.pop %v774
        %v791 = vtanh.pop %v775
        %v792 = vtanh.pop %v776
        %v793 = vtanh.pop %v777
        %v794 = vtanh.pop %v778
        %v795 = vtanh.pop %v779
        %v796 = vtanh.pop %v780
        %v797 = vtanh.pop %v781
        %v798 = vtanh.pop %v782
        %v799 = vtanh.pop %v783
        %v800 = vld [vmem:[%s5] sm:$0x1]
        %v802 = vlaneseq
        %v803 = vshrl.u32 %v802, 7
        %v804 = vsub.s32 0, %v803
        %v805 = vrot.slane %v800, %v804
        %v807 = vmul.f32 %v784, %v805
        %v808 = vmul.f32 %v785, %v805
        %v809 = vmul.f32 %v786, %v805
        %v810 = vmul.f32 %v787, %v805
        %v811 = vmul.f32 %v788, %v805
        %v812 = vmul.f32 %v789, %v805
        %v813 = vmul.f32 %v790, %v805
        %v814 = vmul.f32 %v791, %v805
        %v815 = vmul.f32 %v792, %v805
        %v816 = vmul.f32 %v793, %v805
        %v817 = vmul.f32 %v794, %v805
        %v818 = vmul.f32 %v795, %v805
        %v819 = vmul.f32 %v796, %v805
        %v820 = vmul.f32 %v797, %v805
        %v821 = vmul.f32 %v798, %v805
        %v822 = vmul.f32 %v799, %v805
        %vm823 = vcmask 195584
        %v824 = vsel %vm823, %v807, 0.0
        %825 = vadd.xlane.f32.xlu0 %v824
        %v826 = vpop.xlane.xlu0 %825
        %v827 = vsel %vm823, %v808, 0.0
        %828 = vadd.xlane.f32.xlu0 %v827
        %v829 = vpop.xlane.xlu0 %828
        %v830 = vsel %vm823, %v809, 0.0
        %831 = vadd.xlane.f32.xlu0 %v830
        %v832 = vpop.xlane.xlu0 %831
        %v833 = vsel %vm823, %v810, 0.0
        %834 = vadd.xlane.f32.xlu0 %v833
        %v835 = vpop.xlane.xlu0 %834
        %v836 = vsel %vm823, %v811, 0.0
        %837 = vadd.xlane.f32.xlu0 %v836
        %v838 = vpop.xlane.xlu0 %837
        %v839 = vsel %vm823, %v812, 0.0
        %840 = vadd.xlane.f32.xlu0 %v839
        %v841 = vpop.xlane.xlu0 %840
        %v842 = vsel %vm823, %v813, 0.0
        %843 = vadd.xlane.f32.xlu0 %v842
        %v844 = vpop.xlane.xlu0 %843
        %v845 = vsel %vm823, %v814, 0.0
        %846 = vadd.xlane.f32.xlu0 %v845
        %v847 = vpop.xlane.xlu0 %846
        %v848 = vsel %vm823, %v815, 0.0
        %849 = vadd.xlane.f32.xlu0 %v848
        %v850 = vpop.xlane.xlu0 %849
        %v851 = vsel %vm823, %v816, 0.0
        %852 = vadd.xlane.f32.xlu0 %v851
        %v853 = vpop.xlane.xlu0 %852
        %v854 = vsel %vm823, %v817, 0.0
        %855 = vadd.xlane.f32.xlu0 %v854
        %v856 = vpop.xlane.xlu0 %855
        %v857 = vsel %vm823, %v818, 0.0
        %858 = vadd.xlane.f32.xlu0 %v857
        %v859 = vpop.xlane.xlu0 %858
        %v860 = vsel %vm823, %v819, 0.0
        %861 = vadd.xlane.f32.xlu0 %v860
        %v862 = vpop.xlane.xlu0 %861
        %v863 = vsel %vm823, %v820, 0.0
        %864 = vadd.xlane.f32.xlu0 %v863
        %v865 = vpop.xlane.xlu0 %864
        %v866 = vsel %vm823, %v821, 0.0
        %867 = vadd.xlane.f32.xlu0 %v866
        %v868 = vpop.xlane.xlu0 %867
        %v869 = vsel %vm823, %v822, 0.0
        %870 = vadd.xlane.f32.xlu0 %v869
        %v871 = vpop.xlane.xlu0 %870
        %v872 = vlaneseq
        %v873 = vand.u32 %v872, 127
        %vm874 = vcmp.lt.s32.totalorder %v873, 12
        %v891 = vlaneseq
        %v892 = vshrl.u32 %v891, 7
        %v893 = vsub.s32 %v873, %v892
        %v894 = vrot.slane %v826, %v893
        %v895 = vadd.s32 %v873, 4294967288
        %v896 = vlaneseq
        %v897 = vshrl.u32 %v896, 7
        %v898 = vsub.s32 %v895, %v897
        %v899 = vrot.slane %v829, %v898
        %vm900 = vcmask 130112
        %v901 = vsel %vm900, %v899, %v894
        %v902 = vlaneseq
        %v903 = vshrl.u32 %v902, 7
        %v904 = vsub.s32 %v873, %v903
        %v905 = vrot.slane %v832, %v904
        %v906 = vlaneseq
        %v907 = vshrl.u32 %v906, 7
        %v908 = vsub.s32 %v895, %v907
        %v909 = vrot.slane %v835, %v908
        %v910 = vsel %vm900, %v909, %v905
        %v911 = vlaneseq
        %v912 = vshrl.u32 %v911, 7
        %v913 = vsub.s32 %v873, %v912
        %v914 = vrot.slane %v838, %v913
        %v915 = vlaneseq
        %v916 = vshrl.u32 %v915, 7
        %v917 = vsub.s32 %v895, %v916
        %v918 = vrot.slane %v841, %v917
        %v919 = vsel %vm900, %v918, %v914
        %v920 = vlaneseq
        %v921 = vshrl.u32 %v920, 7
        %v922 = vsub.s32 %v873, %v921
        %v923 = vrot.slane %v844, %v922
        %v924 = vlaneseq
        %v925 = vshrl.u32 %v924, 7
        %v926 = vsub.s32 %v895, %v925
        %v927 = vrot.slane %v847, %v926
        %v928 = vsel %vm900, %v927, %v923
        %v929 = vlaneseq
        %v930 = vshrl.u32 %v929, 7
        %v931 = vsub.s32 %v873, %v930
        %v932 = vrot.slane %v850, %v931
        %v933 = vlaneseq
        %v934 = vshrl.u32 %v933, 7
        %v935 = vsub.s32 %v895, %v934
        %v936 = vrot.slane %v853, %v935
        %v937 = vsel %vm900, %v936, %v932
        %v938 = vlaneseq
        %v939 = vshrl.u32 %v938, 7
        %v940 = vsub.s32 %v873, %v939
        %v941 = vrot.slane %v856, %v940
        %v942 = vlaneseq
        %v943 = vshrl.u32 %v942, 7
        %v944 = vsub.s32 %v895, %v943
        %v945 = vrot.slane %v859, %v944
        %v946 = vsel %vm900, %v945, %v941
        %v947 = vlaneseq
        %v948 = vshrl.u32 %v947, 7
        %v949 = vsub.s32 %v873, %v948
        %v950 = vrot.slane %v862, %v949
        %v951 = vlaneseq
        %v952 = vshrl.u32 %v951, 7
        %v953 = vsub.s32 %v895, %v952
        %v954 = vrot.slane %v865, %v953
        %v955 = vsel %vm900, %v954, %v950
        %v956 = vlaneseq
        %v957 = vshrl.u32 %v956, 7
        %v958 = vsub.s32 %v873, %v957
        %v959 = vrot.slane %v868, %v958
        %v960 = vlaneseq
        %v961 = vshrl.u32 %v960, 7
        %v962 = vsub.s32 %v895, %v961
        %v963 = vrot.slane %v871, %v962
        %v964 = vsel %vm900, %v963, %v959
        %vm965 = vcmask 1041409
        %v966 = vsel %vm965, %v910, %v901
        %vm967 = vcmask 1042434
        %v968 = vsel %vm967, %v919, %v966
        %vm969 = vcmask 1043459
        %v970 = vsel %vm969, %v928, %v968
        %vm971 = vcmask 1044484
        %v972 = vsel %vm971, %v937, %v970
        %vm973 = vcmask 1045509
        %v974 = vsel %vm973, %v946, %v972
        %vm975 = vcmask 1046534
        %v976 = vsel %vm975, %v955, %v974
        %vm977 = vcmask 1047559
        %v978 = vsel %vm977, %v964, %v976
        %v980 = vsel %vm874, %v978, -1e+30
        %vm981 = vcmask 130048
        %v982 = vsel %vm981, %v980, -inf
        %983 = vmax.xlane.f32.xlu0 %v982
        %v984 = vpop.xlane.xlu0 %983
        %v985 = vsub.f32 %v980, %v984
        %v986 = vmul.f32 %v985, 1.442695
        %v987 = vpow.pop %v986
        %v988 = vsel %vm981, %v987, 0.0
        %989 = vadd.xlane.f32.xlu0 %v988
        %v990 = vpop.xlane.xlu0 %989
        %v991 = vrcp.pop %v990
        %v992 = vmul.f32 %v987, %v991
        %993 = vst.msk [vmem:[%s299] sm:$0xff] %vm981, %v992
        %v994 = vlaneseq
        %v995 = vshrl.u32 %v994, 7
        %v996 = vsub.s32 0, %v995
        %v997 = vrot.slane %v992, %v996
        %999 = vbcast.lane.b32.xlu0 %v997, 256
        %v1000 = vpop.permute.xlu0 %999
        %s1002 = sor.u32 256, 8
        %1003 = vbcast.lane.b32.xlu0 %v997, %s1002
        %v1004 = vpop.permute.xlu0 %1003
        %v1005 = vlaneseq
        %v1006 = vshrl.u32 %v1005, 7
        %v1007 = vsub.s32 1, %v1006
        %v1008 = vrot.slane %v992, %v1007
        %1010 = vbcast.lane.b32.xlu0 %v1008, 256
        %v1011 = vpop.permute.xlu0 %1010
        %s1013 = sor.u32 256, 8
        %1014 = vbcast.lane.b32.xlu0 %v1008, %s1013
        %v1015 = vpop.permute.xlu0 %1014
        %v1016 = vlaneseq
        %v1017 = vshrl.u32 %v1016, 7
        %v1018 = vsub.s32 2, %v1017
        %v1019 = vrot.slane %v992, %v1018
        %1021 = vbcast.lane.b32.xlu0 %v1019, 256
        %v1022 = vpop.permute.xlu0 %1021
        %s1024 = sor.u32 256, 8
        %1025 = vbcast.lane.b32.xlu0 %v1019, %s1024
        %v1026 = vpop.permute.xlu0 %1025
        %v1027 = vlaneseq
        %v1028 = vshrl.u32 %v1027, 7
        %v1029 = vsub.s32 3, %v1028
        %v1030 = vrot.slane %v992, %v1029
        %1032 = vbcast.lane.b32.xlu0 %v1030, 256
        %v1033 = vpop.permute.xlu0 %1032
        %s1035 = sor.u32 256, 8
        %1036 = vbcast.lane.b32.xlu0 %v1030, %s1035
        %v1037 = vpop.permute.xlu0 %1036
        %v1038 = vlaneseq
        %v1039 = vshrl.u32 %v1038, 7
        %v1040 = vsub.s32 4, %v1039
        %v1041 = vrot.slane %v992, %v1040
        %1043 = vbcast.lane.b32.xlu0 %v1041, 256
        %v1044 = vpop.permute.xlu0 %1043
        %s1046 = sor.u32 256, 8
        %1047 = vbcast.lane.b32.xlu0 %v1041, %s1046
        %v1048 = vpop.permute.xlu0 %1047
        %v1049 = vlaneseq
        %v1050 = vshrl.u32 %v1049, 7
        %v1051 = vsub.s32 5, %v1050
        %v1052 = vrot.slane %v992, %v1051
        %1054 = vbcast.lane.b32.xlu0 %v1052, 256
        %v1055 = vpop.permute.xlu0 %1054
        %s1057 = sor.u32 256, 8
        %1058 = vbcast.lane.b32.xlu0 %v1052, %s1057
        %v1059 = vpop.permute.xlu0 %1058
        %v1060 = vlaneseq
        %v1061 = vshrl.u32 %v1060, 7
        %v1062 = vsub.s32 6, %v1061
        %v1063 = vrot.slane %v992, %v1062
        %1065 = vbcast.lane.b32.xlu0 %v1063, 256
        %v1066 = vpop.permute.xlu0 %1065
        %s1068 = sor.u32 256, 8
        %1069 = vbcast.lane.b32.xlu0 %v1063, %s1068
        %v1070 = vpop.permute.xlu0 %1069
        %v1071 = vlaneseq
        %v1072 = vshrl.u32 %v1071, 7
        %v1073 = vsub.s32 7, %v1072
        %v1074 = vrot.slane %v992, %v1073
        %1076 = vbcast.lane.b32.xlu0 %v1074, 256
        %v1077 = vpop.permute.xlu0 %1076
        %s1079 = sor.u32 256, 8
        %1080 = vbcast.lane.b32.xlu0 %v1074, %s1079
        %v1081 = vpop.permute.xlu0 %1080
        %v1082 = vmul.f32 %v1000, %v313
        %v1083 = vmul.f32 %v1004, %v314
        %v1084 = vmul.f32 %v1011, %v315
        %v1085 = vmul.f32 %v1015, %v316
        %v1086 = vmul.f32 %v1022, %v317
        %v1087 = vmul.f32 %v1026, %v318
        %v1088 = vmul.f32 %v1033, %v319
        %v1089 = vmul.f32 %v1037, %v320
        %v1090 = vmul.f32 %v1044, %v321
        %v1091 = vmul.f32 %v1048, %v322
        %v1092 = vmul.f32 %v1055, %v323
        %v1093 = vmul.f32 %v1059, %v324
        %v1094 = vmul.f32 %v1066, %v325
        %v1095 = vmul.f32 %v1070, %v326
        %v1096 = vmul.f32 %v1077, %v327
        %v1097 = vmul.f32 %v1081, %v328
        %v1098 = vsel %vm335, %v1082, 0.0
        %v1099 = vsel %vm335, %v1083, 0.0
        %v1100 = vadd.f32 %v1098, %v1099
        %v1101 = vrot.slane %v1100, 4
        %v1102 = vadd.f32 %v1100, %v1101
        %v1103 = vrot.slane %v1102, 2
        %v1104 = vadd.f32 %v1102, %v1103
        %v1105 = vrot.slane %v1104, 1
        %v1106 = vadd.f32 %v1104, %v1105
        %v1107 = vsel %vm335, %v1084, 0.0
        %v1108 = vsel %vm335, %v1085, 0.0
        %v1109 = vadd.f32 %v1107, %v1108
        %v1110 = vrot.slane %v1109, 4
        %v1111 = vadd.f32 %v1109, %v1110
        %v1112 = vrot.slane %v1111, 2
        %v1113 = vadd.f32 %v1111, %v1112
        %v1114 = vrot.slane %v1113, 1
        %v1115 = vadd.f32 %v1113, %v1114
        %v1116 = vsel %vm335, %v1086, 0.0
        %v1117 = vsel %vm335, %v1087, 0.0
        %v1118 = vadd.f32 %v1116, %v1117
        %v1119 = vrot.slane %v1118, 4
        %v1120 = vadd.f32 %v1118, %v1119
        %v1121 = vrot.slane %v1120, 2
        %v1122 = vadd.f32 %v1120, %v1121
        %v1123 = vrot.slane %v1122, 1
        %v1124 = vadd.f32 %v1122, %v1123
        %v1125 = vsel %vm335, %v1088, 0.0
        %v1126 = vsel %vm335, %v1089, 0.0
        %v1127 = vadd.f32 %v1125, %v1126
        %v1128 = vrot.slane %v1127, 4
        %v1129 = vadd.f32 %v1127, %v1128
        %v1130 = vrot.slane %v1129, 2
        %v1131 = vadd.f32 %v1129, %v1130
        %v1132 = vrot.slane %v1131, 1
        %v1133 = vadd.f32 %v1131, %v1132
        %v1134 = vsel %vm335, %v1090, 0.0
        %v1135 = vsel %vm335, %v1091, 0.0
        %v1136 = vadd.f32 %v1134, %v1135
        %v1137 = vrot.slane %v1136, 4
        %v1138 = vadd.f32 %v1136, %v1137
        %v1139 = vrot.slane %v1138, 2
        %v1140 = vadd.f32 %v1138, %v1139
        %v1141 = vrot.slane %v1140, 1
        %v1142 = vadd.f32 %v1140, %v1141
        %v1143 = vsel %vm335, %v1092, 0.0
        %v1144 = vsel %vm335, %v1093, 0.0
        %v1145 = vadd.f32 %v1143, %v1144
        %v1146 = vrot.slane %v1145, 4
        %v1147 = vadd.f32 %v1145, %v1146
        %v1148 = vrot.slane %v1147, 2
        %v1149 = vadd.f32 %v1147, %v1148
        %v1150 = vrot.slane %v1149, 1
        %v1151 = vadd.f32 %v1149, %v1150
        %v1152 = vsel %vm335, %v1094, 0.0
        %v1153 = vsel %vm335, %v1095, 0.0
        %v1154 = vadd.f32 %v1152, %v1153
        %v1155 = vrot.slane %v1154, 4
        %v1156 = vadd.f32 %v1154, %v1155
        %v1157 = vrot.slane %v1156, 2
        %v1158 = vadd.f32 %v1156, %v1157
        %v1159 = vrot.slane %v1158, 1
        %v1160 = vadd.f32 %v1158, %v1159
        %v1161 = vsel %vm335, %v1096, 0.0
        %v1162 = vsel %vm335, %v1097, 0.0
        %v1163 = vadd.f32 %v1161, %v1162
        %v1164 = vrot.slane %v1163, 4
        %v1165 = vadd.f32 %v1163, %v1164
        %v1166 = vrot.slane %v1165, 2
        %v1167 = vadd.f32 %v1165, %v1166
        %v1168 = vrot.slane %v1167, 1
        %v1169 = vadd.f32 %v1167, %v1168
        %vm1170 = vcmask 385024
        %1171 = vst.msk [vmem:[%s292] sm:$0x1] %vm1170, %v1106
        %1172 = vst.msk [vmem:[%s292 + $0x1] sm:$0x1] %vm1170, %v1115
        %1173 = vst.msk [vmem:[%s292 + $0x2] sm:$0x1] %vm1170, %v1124
        %1174 = vst.msk [vmem:[%s292 + $0x3] sm:$0x1] %vm1170, %v1133
        %1175 = vst.msk [vmem:[%s292 + $0x4] sm:$0x1] %vm1170, %v1142
        %1176 = vst.msk [vmem:[%s292 + $0x5] sm:$0x1] %vm1170, %v1151
        %1177 = vst.msk [vmem:[%s292 + $0x6] sm:$0x1] %vm1170, %v1160
        %1178 = vst.msk [vmem:[%s292 + $0x7] sm:$0x1] %vm1170, %v1169
        %s1179 = sand.u32 %s169, 1
        %s1180 = scalar_lea.sflag [#allocation3], %s1179
        %s1181 = sand.u32 %s169, 1
        %s1182 = smul.addr %s1181, 8
        %s1183 = scalar_lea.vmem [#allocation2], %s1182
        %s1184 = sand.u32 %s195, 1
        %s1185 = scalar_lea.sflag [#allocation5], %s1184
        %s1186 = sand.u32 %s195, 1
        %s1187 = smul.addr %s1186, 8
        %s1188 = scalar_lea.vmem [#allocation4], %s1187
        // Predicated region
        $region45: #{attention_pallas.1} parent=43 // pred_check
          %p1189 = pneg %p179
        $region46: #{attention_pallas.1} parent=43 // pred_check_branch
          %1191 = sbr.rel (%p1189) target = $region48
        $region47: #{attention_pallas.1} parent=43 // pred_region
          %s1192 = smul.u32 8, %s25
          %s1194 = ssub.s32 128, 128
          %1195 = vsyncadd %s1180, %s1194
          %s1196 = smul.addr %s1192, 16
          %s1197 = scalar_lea.hbm %s6, %s1196
          %s1198 = sshll.u32 %s1183, 4
          %s1199 = int_to_ptr.vmem [resolvable:$true] %s1198
          %1204 = dma.vmem_to_hbm [thread:$0]  %s1199, 128, %s1197, %s1180, 16, 16, 1
        $region48: #{attention_pallas.1} parent=43 // pred_fallthru
          _
        // Predicated region
        $region49: #{attention_pallas.1} parent=43 // pred_check
          %p1205 = pneg %p205
        $region50: #{attention_pallas.1} parent=43 // pred_check_branch
          %1207 = sbr.rel (%p1205) target = $region52
        $region51: #{attention_pallas.1} parent=43 // pred_region
          %s1209 = ssub.s32 128, 128
          %1210 = vsyncadd %s1185, %s1209
          %s1211 = smul.addr %s25, 128
          %s1212 = scalar_lea.hbm %s7, %s1211
          %s1214 = sshll.u32 %s1188, 4
          %s1215 = int_to_ptr.vmem [resolvable:$true] %s1214
          %1217 = dma.vmem_to_hbm [thread:$0]  %s1215, 128, %s1212, %s1185
        $region52: #{attention_pallas.1} parent=43 // pred_fallthru
          _
      $region44: #{attention_pallas.1} parent=5 // pred_fallthru
        _
      %p1218 = scmp.le.s32.totalorder 2, %s20
      // Predicated region
      $region53: #{attention_pallas.1} parent=5 // pred_check
        %p1219 = pneg %p1218
      $region54: #{attention_pallas.1} parent=5 // pred_check_branch
        %1221 = sbr.rel (%p1219) target = $region56
      $region55: #{attention_pallas.1} parent=5 // pred_region
        %s1222 = ssub.s32 %s20, 2
        // Predicated region
        $region57: #{attention_pallas.1} parent=55 // pred_check
          %p1223 = pneg %p185
        $region58: #{attention_pallas.1} parent=55 // pred_check_branch
          %1225 = sbr.rel (%p1223) target = $region60
        $region59: #{attention_pallas.1} parent=55 // pred_region
          %s1226 = sand.u32 %s170, 1
          %s1227 = scalar_lea.sflag [#allocation3], %s1226
          %s1228 = sand.u32 %s170, 1
          %s1229 = smul.addr %s1228, 8
          %s1230 = scalar_lea.vmem [#allocation2], %s1229
          %1231 = dma.done %s1227, 128
        $region60: #{attention_pallas.1} parent=55 // pred_fallthru
          _
        // Predicated region
        $region61: #{attention_pallas.1} parent=55 // pred_check
          %p1232 = pneg %p211
        $region62: #{attention_pallas.1} parent=55 // pred_check_branch
          %1234 = sbr.rel (%p1232) target = $region64
        $region63: #{attention_pallas.1} parent=55 // pred_region
          %s1235 = sand.u32 %s196, 1
          %s1236 = scalar_lea.sflag [#allocation5], %s1235
          %s1237 = sand.u32 %s196, 1
          %s1238 = smul.addr %s1237, 8
          %s1239 = scalar_lea.vmem [#allocation4], %s1238
          %1240 = dma.done %s1236, 128
        $region64: #{attention_pallas.1} parent=55 // pred_fallthru
          _
      $region56: #{attention_pallas.1} parent=5 // pred_fallthru
        _
    $region6: #{attention_pallas.1} parent=1 // loop_footer
      %s24 = sadd.s32 1, %s20
    $region7: #{attention_pallas.1} parent=1 // loop_footer_branch
      %19 = sbr.rel target = $region3
    $region8: #{attention_pallas.1} parent=1 // loop_exit
      _
    %1241 = vsyncpa [#allocation3], 1
    %s1242 = scalar_lea.sflag [#allocation3], 1
    %1243 = vsyncpa %s1242, 1
    %1244 = vsyncpa [#allocation5], 1
    %s1245 = scalar_lea.sflag [#allocation5], 1
    %1246 = vsyncpa %s1245, 1

</llo_original>
